<compile_context>
chip_gen: v7x
topology: tpu7x:2x2x1
jax: 0.10.0
libtpu: 0.0.40
codegen_flags: <defaults>
</compile_context>

<pallas_src>
from functools import partial

import jax
import jax.numpy as jnp
from jax.experimental import pallas as pl
from jax.experimental.pallas import tpu as pltpu


def _round_up(x, m):
    return ((x + m - 1) // m) * m


def _device_kind():
    try:
        return jax.devices()[0].device_kind.lower()
    except Exception:
        return ""


def _dro_loss_kernel(protos_ref, psq_ref, scale_ref, pres_ref, bt_ref, x_ref,
                     xsq_ref, out_ref, m_sc, l_sc, s_sc,
                     *, two_inv_temp_sq, loss_scale, exp_dtype):
    j = pl.program_id(1)                  # batch-tile index (reduction axis)
    cc_t = out_ref.shape[0]               # class-tile height (static)

    # ---- per-class-tile init of the online-LSE state ----
    @pl.when(j == 0)
    def _init():
        m_sc[...] = jnp.full(m_sc.shape, -1e30, jnp.float32)
        l_sc[...] = jnp.zeros(l_sc.shape, jnp.float32)
        s_sc[...] = jnp.zeros(s_sc.shape, jnp.float32)

    # ---- streamed batch tile: bf16 MXU matmul, contract last dims (no .T) ----
    dots = jax.lax.dot_general(
        protos_ref[...], x_ref[...],
        dimension_numbers=(((1,), (1,)), ((), ())),
        preferred_element_type=jnp.float32)                        # (Cc_t, B_t)

    # squared distance, pre-scaled by 1/T^2 -> logits = -cdist/T directly.
    # Padded batch columns carry xsq=1e30 so their logits ~ -1e15 and vanish
    # from the softmax; their labels are -1 so they never match a class id.
    d2 = jnp.maximum(psq_ref[...] + xsq_ref[...] - two_inv_temp_sq * dots, 0.0)
    logits = -jnp.sqrt(d2)                                         # (Cc_t, B_t)

    # positive mask rebuilt in-kernel: class ids of this tile vs batch labels
    cls_ids = (pl.program_id(0) * cc_t
               + jax.lax.broadcasted_iota(jnp.int32, (cc_t, 1), 0))
    pos = bt_ref[...] == cls_ids                                   # (Cc_t, B_t)
    s_sc[...] = s_sc[...] + jnp.sum(jnp.where(pos, logits, 0.0),
                                    axis=1, keepdims=True)

    # online log-sum-exp over the batch axis (exp in bf16 on v6e/v7x)
    m_prev = m_sc[...]
    m_new = jnp.maximum(m_prev, jnp.max(logits, axis=1, keepdims=True))
    p = jnp.exp((logits - m_new).astype(exp_dtype))
    l_sc[...] = (jnp.exp(m_prev - m_new) * l_sc[...]
                 + jnp.sum(p.astype(jnp.float32), axis=1, keepdims=True))
    m_sc[...] = m_new

    # ---- finalize after the last batch tile ----
    @pl.when(j == pl.num_programs(1) - 1)
    def _finalize():
        lse = m_sc[...] + jnp.log(l_sc[...])
        # lp_pos[i] = present/count * sum_{bt==i} logits - lse * [present in both]
        out_ref[...] = loss_scale * (scale_ref[...] * s_sc[...]
                                     - lse * pres_ref[...])


def dro_loss(batch_feats, batch_targets, centroid_feats, centroid_targets,
             num_classes, temperature=0.07, base_temperature=0.07,
             block_b=1024, block_c=256, use_bf16_exp=None):
    """JAX/Pallas equivalent of DROLoss.forward (class_weights=None, epsilons=None).

    `num_classes` is a static upper bound on class ids (0..num_classes-1); it
    fixes all shapes so the kernel compiles once per configuration.
    """
    batch_feats = jnp.asarray(batch_feats, jnp.float32)
    centroid_feats = jnp.asarray(centroid_feats, jnp.float32)
    bt = jnp.asarray(batch_targets, jnp.int32)
    ct = jnp.asarray(centroid_targets, jnp.int32)

    B, D = batch_feats.shape
    M, _ = centroid_feats.shape

    kind = _device_kind()
    if use_bf16_exp is None:
        use_bf16_exp = ("v6" in kind) or ("v7" in kind)   # bf16 EUP path
    exp_dtype = jnp.bfloat16 if use_bf16_exp else jnp.float32

    # ---- static padded, lane/sublane-dense shapes ----
    D_pad = _round_up(D, 128)
    block_c = max(16, _round_up(int(block_c), 16))
    Cc_t = min(_round_up(int(num_classes), 16), block_c)
    C_pad = _round_up(int(num_classes), Cc_t)
    # v7x megacore: keep >= 2 class tiles so both TensorCores get work.
    if ("v7" in kind) and (C_pad // Cc_t) < 2 and num_classes > 16:
        Cc_t = _round_up((int(num_classes) + 1) // 2, 16)
        C_pad = _round_up(int(num_classes), Cc_t)

    block_b = max(128, _round_up(int(block_b), 128))
    B_t = _round_up(B, 128) if B <= block_b else block_b
    B_pad = _round_up(B, B_t)

    inv_t = 1.0 / float(temperature)
    inv_t_sq = inv_t * inv_t

    # ---- prototypes + per-class constants (tiny XLA segment-sums) ----
    counts_c = jnp.zeros((C_pad,), jnp.float32).at[ct].add(1.0)
    proto_sum = jnp.zeros((C_pad, D), jnp.float32).at[ct].add(centroid_feats)
    protos = proto_sum / jnp.maximum(counts_c, 1.0)[:, None]          # (C_pad, D)
    present_c = (counts_c > 0).astype(jnp.float32)

    counts_b = jnp.zeros((C_pad,), jnp.float32).at[bt].add(1.0)
    n_classes = jnp.sum((counts_b > 0).astype(jnp.float32))           # |unique(bt)|

    psq = (jnp.sum(protos * protos, axis=1) * inv_t_sq)[:, None]      # (C_pad, 1)
    scale = (present_c / jnp.maximum(counts_b, 1.0))[:, None]         # (C_pad, 1)
    pres = (present_c * (counts_b > 0).astype(jnp.float32))[:, None]  # (C_pad, 1)

    protos_bf = (jnp.zeros((C_pad, D_pad), jnp.float32)
                 .at[:, :D].set(protos)).astype(jnp.bfloat16)

    # ---- padded batch-side inputs ----
    x_bf = (jnp.zeros((B_pad, D_pad), jnp.float32)
            .at[:B, :D].set(batch_feats)).astype(jnp.bfloat16)        # bf16 HBM stream
    xsq = jnp.full((B_pad,), 1e30, jnp.float32).at[:B].set(
        jnp.sum(batch_feats * batch_feats, axis=1) * inv_t_sq)[None, :]
    bt_pad = jnp.full((B_pad,), -1, jnp.int32).at[:B].set(bt)[None, :]

    kernel = partial(_dro_loss_kernel,
                     two_inv_temp_sq=2.0 * inv_t_sq,
                     loss_scale=-(float(temperature) / float(base_temperature)),
                     exp_dtype=exp_dtype)

    grid = (C_pad // Cc_t, B_pad // B_t)

    loss_rows = pl.pallas_call(
        kernel,
        out_shape=jax.ShapeDtypeStruct((C_pad, 1), jnp.float32),
        grid=grid,
        in_specs=[
            pl.BlockSpec((Cc_t, D_pad), lambda i, j: (i, 0)),   # prototypes (bf16)
            pl.BlockSpec((Cc_t, 1),     lambda i, j: (i, 0)),   # ||p||^2 / T^2
            pl.BlockSpec((Cc_t, 1),     lambda i, j: (i, 0)),   # present/count scale
            pl.BlockSpec((Cc_t, 1),     lambda i, j: (i, 0)),   # present-in-both gate
            pl.BlockSpec((1, B_t),      lambda i, j: (0, j)),   # batch labels (int32)
            pl.BlockSpec((B_t, D_pad),  lambda i, j: (j, 0)),   # batch feats (bf16)
            pl.BlockSpec((1, B_t),      lambda i, j: (0, j)),   # ||x||^2 / T^2
        ],
        out_specs=pl.BlockSpec((Cc_t, 1), lambda i, j: (i, 0)),
        scratch_shapes=[
            pltpu.VMEM((Cc_t, 1), jnp.float32),   # running max
            pltpu.VMEM((Cc_t, 1), jnp.float32),   # running sum-exp
            pltpu.VMEM((Cc_t, 1), jnp.float32),   # sum of positive logits
        ],
        compiler_params=pltpu.CompilerParams(
            dimension_semantics=("parallel", "arbitrary"),
        ),
    )(protos_bf, psq, scale, pres, bt_pad, x_bf, xsq)

    return jnp.sum(loss_rows) / jnp.maximum(n_classes, 1.0)


if __name__ == "__main__":
    key = jax.random.PRNGKey(0)
    k1, k2, k3 = jax.random.split(key, 3)

    B, D, M, C = 16, 32, 8, 4
    batch_feats = jax.random.normal(k1, (B, D), dtype=jnp.float32)
    centroid_feats = jax.random.normal(k2, (M, D), dtype=jnp.float32)
    batch_targets = jax.random.randint(k3, (B,), 0, C)
    centroid_targets = jnp.array([0, 0, 1, 1, 2, 2, 3, 3], dtype=jnp.int32)

    loss = dro_loss(batch_feats, batch_targets, centroid_feats, centroid_targets,
                    num_classes=C)
    jax.block_until_ready(loss)
    print("KERNEL_OK")
</pallas_src>

<mosaic_0001>
module attributes {stable_mosaic.version = 11 : i64} {
  func.func @_dro_loss_kernel(%arg0: i32, %arg1: i32, %arg2: memref<16x128xbf16, #tpu.memory_space<vmem>>, %arg3: memref<16x1xf32, #tpu.memory_space<vmem>>, %arg4: memref<16x1xf32, #tpu.memory_space<vmem>>, %arg5: memref<16x1xf32, #tpu.memory_space<vmem>>, %arg6: memref<1x128xi32, #tpu.memory_space<vmem>>, %arg7: memref<128x128xbf16, #tpu.memory_space<vmem>>, %arg8: memref<1x128xf32, #tpu.memory_space<vmem>>, %arg9: memref<16x1xf32, #tpu.memory_space<vmem>>, %arg10: memref<16x1xf32, #tpu.memory_space<vmem>>, %arg11: memref<16x1xf32, #tpu.memory_space<vmem>>, %arg12: memref<16x1xf32, #tpu.memory_space<vmem>>) attributes {dimension_semantics = [#tpu.dimension_semantics<parallel>, #tpu.dimension_semantics<arbitrary>], iteration_bounds = array<i64: 1, 1>, scalar_prefetch = 0 : i64, scratch_operands = 3 : i64, tpu.core_type = #tpu.core_type<tc>, window_params = [{transform_indices = @transform_0, window_bounds = array<i64: 16, 128>}, {transform_indices = @transform_1, window_bounds = array<i64: 16, 1>}, {transform_indices = @transform_2, window_bounds = array<i64: 16, 1>}, {transform_indices = @transform_3, window_bounds = array<i64: 16, 1>}, {transform_indices = @transform_4, window_bounds = array<i64: 1, 128>}, {transform_indices = @transform_5, window_bounds = array<i64: 128, 128>}, {transform_indices = @transform_6, window_bounds = array<i64: 1, 128>}, {transform_indices = @transform_7, window_bounds = array<i64: 16, 1>}]} {
    %c0_i32 = arith.constant 0 : i32
    %0 = arith.cmpi eq, %arg1, %c0_i32 : i32
    %1 = arith.extui %0 : i1 to i32
    %c0_i32_0 = arith.constant 0 : i32
    %2 = arith.cmpi ne, %1, %c0_i32_0 : i32
    scf.if %2 {
      %cst_31 = arith.constant -1.000000e+30 : f32
      %53 = vector.broadcast %cst_31 : f32 to vector<16x1xf32>
      %c0_32 = arith.constant 0 : index
      %c0_33 = arith.constant 0 : index
      %54 = vector.load %arg10[%c0_32, %c0_33] : memref<16x1xf32, #tpu.memory_space<vmem>>, vector<16x1xf32>
      tpu.vector_store %arg10[%c0_32, %c0_33], %53 {strides = array<i32>} : memref<16x1xf32, #tpu.memory_space<vmem>>, vector<16x1xf32>,
      %cst_34 = arith.constant 0.000000e+00 : f32
      %55 = vector.broadcast %cst_34 : f32 to vector<16x1xf32>
      %c0_35 = arith.constant 0 : index
      %c0_36 = arith.constant 0 : index
      %56 = vector.load %arg11[%c0_35, %c0_36] : memref<16x1xf32, #tpu.memory_space<vmem>>, vector<16x1xf32>
      tpu.vector_store %arg11[%c0_35, %c0_36], %55 {strides = array<i32>} : memref<16x1xf32, #tpu.memory_space<vmem>>, vector<16x1xf32>,
      %cst_37 = arith.constant 0.000000e+00 : f32
      %57 = vector.broadcast %cst_37 : f32 to vector<16x1xf32>
      %c0_38 = arith.constant 0 : index
      %c0_39 = arith.constant 0 : index
      %58 = vector.load %arg12[%c0_38, %c0_39] : memref<16x1xf32, #tpu.memory_space<vmem>>, vector<16x1xf32>
      tpu.vector_store %arg12[%c0_38, %c0_39], %57 {strides = array<i32>} : memref<16x1xf32, #tpu.memory_space<vmem>>, vector<16x1xf32>,
    } else {
    }
    %c0 = arith.constant 0 : index
    %c0_1 = arith.constant 0 : index
    %3 = vector.load %arg2[%c0, %c0_1] : memref<16x128xbf16, #tpu.memory_space<vmem>>, vector<16x128xbf16>
    %c0_2 = arith.constant 0 : index
    %c0_3 = arith.constant 0 : index
    %4 = vector.load %arg7[%c0_2, %c0_3] : memref<128x128xbf16, #tpu.memory_space<vmem>>, vector<128x128xbf16>
    %cst = arith.constant dense<0.000000e+00> : vector<16x128xf32>
    %5 = tpu.matmul %3, %4, %cst {dimension_numbers = #tpu.dot_dimension_numbers<[1], [1], [0], [0], [0, 0, 1, 0], [], []>} : vector<16x128xbf16>, vector<128x128xbf16>, vector<16x128xf32> -> vector<16x128xf32>
    %c0_4 = arith.constant 0 : index
    %c0_5 = arith.constant 0 : index
    %6 = vector.load %arg3[%c0_4, %c0_5] : memref<16x1xf32, #tpu.memory_space<vmem>>, vector<16x1xf32>
    %c0_6 = arith.constant 0 : index
    %c0_7 = arith.constant 0 : index
    %7 = vector.load %arg8[%c0_6, %c0_7] : memref<1x128xf32, #tpu.memory_space<vmem>>, vector<1x128xf32>
    %8 = vector.broadcast %6 : vector<16x1xf32> to vector<16x128xf32>
    %9 = vector.broadcast %7 : vector<1x128xf32> to vector<16x128xf32>
    %10 = arith.addf %8, %9 : vector<16x128xf32>
    %cst_8 = arith.constant 408.163269 : f32
    %11 = vector.broadcast %cst_8 : f32 to vector<16x128xf32>
    %12 = arith.mulf %11, %5 : vector<16x128xf32>
    %13 = arith.subf %10, %12 : vector<16x128xf32>
    %cst_9 = arith.constant 0.000000e+00 : f32
    %14 = vector.broadcast %cst_9 : f32 to vector<16x128xf32>
    %15 = arith.maximumf %13, %14 : vector<16x128xf32>
    %16 = math.sqrt %15 : vector<16x128xf32>
    %cst_10 = arith.constant 0.000000e+00 : f32
    %17 = vector.broadcast %cst_10 : f32 to vector<16x128xf32>
    %18 = arith.subf %17, %16 : vector<16x128xf32>
    %c16_i32 = arith.constant 16 : i32
    %19 = arith.muli %arg0, %c16_i32 : i32
    %20 = tpu.iota {dimensions = array<i32: 0>} : vector<16x1xi32>
    %21 = vector.broadcast %19 : i32 to vector<16x1xi32>
    %22 = arith.addi %21, %20 : vector<16x1xi32>
    %c0_11 = arith.constant 0 : index
    %c0_12 = arith.constant 0 : index
    %23 = vector.load %arg6[%c0_11, %c0_12] : memref<1x128xi32, #tpu.memory_space<vmem>>, vector<1x128xi32>
    %24 = vector.broadcast %23 : vector<1x128xi32> to vector<16x128xi32>
    %25 = vector.broadcast %22 : vector<16x1xi32> to vector<16x128xi32>
    %26 = arith.cmpi eq, %24, %25 : vector<16x128xi32>
    %c0_13 = arith.constant 0 : index
    %c0_14 = arith.constant 0 : index
    %27 = vector.load %arg12[%c0_13, %c0_14] : memref<16x1xf32, #tpu.memory_space<vmem>>, vector<16x1xf32>
    %cst_15 = arith.constant 0.000000e+00 : f32
    %28 = vector.broadcast %cst_15 : f32 to vector<16x128xf32>
    %29 = arith.select %26, %18, %28 : vector<16x128xi1>, vector<16x128xf32>
    %cst_16 = arith.constant dense<0.000000e+00> : vector<16xf32>
    %30 = vector.multi_reduction <add>, %29, %cst_16 [1] : vector<16x128xf32> to vector<16xf32>
    %31 = vector.shape_cast %30 : vector<16xf32> to vector<16x1xf32>
    %32 = arith.addf %27, %31 : vector<16x1xf32>
    %c0_17 = arith.constant 0 : index
    %c0_18 = arith.constant 0 : index
    %33 = vector.load %arg12[%c0_17, %c0_18] : memref<16x1xf32, #tpu.memory_space<vmem>>, vector<16x1xf32>
    tpu.vector_store %arg12[%c0_17, %c0_18], %32 {strides = array<i32>} : memref<16x1xf32, #tpu.memory_space<vmem>>, vector<16x1xf32>,
    %c0_19 = arith.constant 0 : index
    %c0_20 = arith.constant 0 : index
    %34 = vector.load %arg10[%c0_19, %c0_20] : memref<16x1xf32, #tpu.memory_space<vmem>>, vector<16x1xf32>
    %cst_21 = arith.constant dense<0xFF800000> : vector<16xf32>
    %35 = vector.multi_reduction <maximumf>, %18, %cst_21 [1] : vector<16x128xf32> to vector<16xf32>
    %36 = vector.shape_cast %35 : vector<16xf32> to vector<16x1xf32>
    %37 = arith.maximumf %34, %36 : vector<16x1xf32>
    %38 = vector.broadcast %37 : vector<16x1xf32> to vector<16x128xf32>
    %39 = arith.subf %18, %38 : vector<16x128xf32>
    %40 = math.exp %39 : vector<16x128xf32>
    %41 = arith.subf %34, %37 : vector<16x1xf32>
    %42 = math.exp %41 : vector<16x1xf32>
    %c0_22 = arith.constant 0 : index
    %c0_23 = arith.constant 0 : index
    %43 = vector.load %arg11[%c0_22, %c0_23] : memref<16x1xf32, #tpu.memory_space<vmem>>, vector<16x1xf32>
    %44 = arith.mulf %42, %43 : vector<16x1xf32>
    %cst_24 = arith.constant dense<0.000000e+00> : vector<16xf32>
    %45 = vector.multi_reduction <add>, %40, %cst_24 [1] : vector<16x128xf32> to vector<16xf32>
    %46 = vector.shape_cast %45 : vector<16xf32> to vector<16x1xf32>
    %47 = arith.addf %44, %46 : vector<16x1xf32>
    %c0_25 = arith.constant 0 : index
    %c0_26 = arith.constant 0 : index
    %48 = vector.load %arg11[%c0_25, %c0_26] : memref<16x1xf32, #tpu.memory_space<vmem>>, vector<16x1xf32>
    tpu.vector_store %arg11[%c0_25, %c0_26], %47 {strides = array<i32>} : memref<16x1xf32, #tpu.memory_space<vmem>>, vector<16x1xf32>,
    %c0_27 = arith.constant 0 : index
    %c0_28 = arith.constant 0 : index
    %49 = vector.load %arg10[%c0_27, %c0_28] : memref<16x1xf32, #tpu.memory_space<vmem>>, vector<16x1xf32>
    tpu.vector_store %arg10[%c0_27, %c0_28], %37 {strides = array<i32>} : memref<16x1xf32, #tpu.memory_space<vmem>>, vector<16x1xf32>,
    %c0_i32_29 = arith.constant 0 : i32
    %50 = arith.cmpi eq, %arg1, %c0_i32_29 : i32
    %51 = arith.extui %50 : i1 to i32
    %c0_i32_30 = arith.constant 0 : i32
    %52 = arith.cmpi ne, %51, %c0_i32_30 : i32
    scf.if %52 {
      %c0_31 = arith.constant 0 : index
      %c0_32 = arith.constant 0 : index
      %53 = vector.load %arg10[%c0_31, %c0_32] : memref<16x1xf32, #tpu.memory_space<vmem>>, vector<16x1xf32>
      %c0_33 = arith.constant 0 : index
      %c0_34 = arith.constant 0 : index
      %54 = vector.load %arg11[%c0_33, %c0_34] : memref<16x1xf32, #tpu.memory_space<vmem>>, vector<16x1xf32>
      %55 = math.log %54 : vector<16x1xf32>
      %56 = arith.addf %53, %55 : vector<16x1xf32>
      %c0_35 = arith.constant 0 : index
      %c0_36 = arith.constant 0 : index
      %57 = vector.load %arg4[%c0_35, %c0_36] : memref<16x1xf32, #tpu.memory_space<vmem>>, vector<16x1xf32>
      %c0_37 = arith.constant 0 : index
      %c0_38 = arith.constant 0 : index
      %58 = vector.load %arg12[%c0_37, %c0_38] : memref<16x1xf32, #tpu.memory_space<vmem>>, vector<16x1xf32>
      %59 = arith.mulf %57, %58 : vector<16x1xf32>
      %c0_39 = arith.constant 0 : index
      %c0_40 = arith.constant 0 : index
      %60 = vector.load %arg5[%c0_39, %c0_40] : memref<16x1xf32, #tpu.memory_space<vmem>>, vector<16x1xf32>
      %61 = arith.mulf %56, %60 : vector<16x1xf32>
      %62 = arith.subf %59, %61 : vector<16x1xf32>
      %cst_41 = arith.constant -1.000000e+00 : f32
      %63 = vector.broadcast %cst_41 : f32 to vector<16x1xf32>
      %64 = arith.mulf %63, %62 : vector<16x1xf32>
      %c0_42 = arith.constant 0 : index
      %c0_43 = arith.constant 0 : index
      %65 = vector.load %arg9[%c0_42, %c0_43] : memref<16x1xf32, #tpu.memory_space<vmem>>, vector<16x1xf32>
      tpu.vector_store %arg9[%c0_42, %c0_43], %64 {strides = array<i32>} : memref<16x1xf32, #tpu.memory_space<vmem>>, vector<16x1xf32>,
    } else {
    }
    return
  }
  func.func @transform_0(%arg0: i32, %arg1: i32) -> (i32, i32) {
    %c0_i32 = arith.constant 0 : i32
    %c0_i32_0 = arith.constant 0 : i32
    return %arg0, %c0_i32 : i32, i32
  }
  func.func @transform_1(%arg0: i32, %arg1: i32) -> (i32, i32) {
    %c0_i32 = arith.constant 0 : i32
    %c0_i32_0 = arith.constant 0 : i32
    return %arg0, %c0_i32 : i32, i32
  }
  func.func @transform_2(%arg0: i32, %arg1: i32) -> (i32, i32) {
    %c0_i32 = arith.constant 0 : i32
    %c0_i32_0 = arith.constant 0 : i32
    return %arg0, %c0_i32 : i32, i32
  }
  func.func @transform_3(%arg0: i32, %arg1: i32) -> (i32, i32) {
    %c0_i32 = arith.constant 0 : i32
    %c0_i32_0 = arith.constant 0 : i32
    return %arg0, %c0_i32 : i32, i32
  }
  func.func @transform_4(%arg0: i32, %arg1: i32) -> (i32, i32) {
    %c0_i32 = arith.constant 0 : i32
    %c0_i32_0 = arith.constant 0 : i32
    return %c0_i32, %arg1 : i32, i32
  }
  func.func @transform_5(%arg0: i32, %arg1: i32) -> (i32, i32) {
    %c0_i32 = arith.constant 0 : i32
    %c0_i32_0 = arith.constant 0 : i32
    return %arg1, %c0_i32 : i32, i32
  }
  func.func @transform_6(%arg0: i32, %arg1: i32) -> (i32, i32) {
    %c0_i32 = arith.constant 0 : i32
    %c0_i32_0 = arith.constant 0 : i32
    return %c0_i32, %arg1 : i32, i32
  }
  func.func @transform_7(%arg0: i32, %arg1: i32) -> (i32, i32) {
    %c0_i32 = arith.constant 0 : i32
    %c0_i32_0 = arith.constant 0 : i32
    return %arg0, %c0_i32 : i32, i32
  }
}

</mosaic_0001>

<llo_original>
// kernel: tpu_custom_call.1
$region0: #{tpu_custom_call.1}
  #allocation0 [shape = 'u32[]', space=smem, size = 0x4, offset = 0x4, fixed_abs, tag = 'smem constant byte address 0x4 - core index']
  #allocation1 [shape = 'u32[144,128]{1,0:T(1,128)}', space=vmem, size = 0x12000, scoped, tag = 'internal scratch']
  #allocation2 [shape = 'f32[16,1]{1,0:T(8,128)}', space=vmem, size = 0x2000, scoped, tag = 'scratch operand']
  #allocation3 [shape = 'f32[16,1]{1,0:T(8,128)}', space=vmem, size = 0x2000, scoped, tag = 'scratch operand']
  #allocation4 [shape = 'f32[16,1]{1,0:T(8,128)}', space=vmem, size = 0x2000, scoped, tag = 'scratch operand']
  %s0 = inlined_call_operand.hbm [shape: bf16[16,128], index: 0, kind: input, shape index: {}]
  %s1 = inlined_call_operand.vmem [shape: f32[16,1], index: 1, kind: input, shape index: {}]
  %s2 = inlined_call_operand.vmem [shape: f32[16,1], index: 2, kind: input, shape index: {}]
  %s3 = inlined_call_operand.vmem [shape: f32[16,1], index: 3, kind: input, shape index: {}]
  %s4 = inlined_call_operand.vmem [shape: s32[1,128], index: 4, kind: input, shape index: {}]
  %s5 = inlined_call_operand.vmem [shape: bf16[128,128], index: 5, kind: input, shape index: {}]
  %s6 = inlined_call_operand.vmem [shape: f32[1,128], index: 6, kind: input, shape index: {}]
  %s7 = inlined_call_operand.vmem [shape: f32[16,1], index: 7, kind: output, shape index: {}]
  %s8 = sld [smem:[#allocation0]]
  $region50: #{tpu_custom_call.1} parent=0
    _
  %s10 = ssub.s32 1, %s8
  %s11 = scalar_select 0, %s10, %s8
  $region1: #{tpu_custom_call.1} parent=0
    #allocation5 [shape = 'u8[4096]{0}', space=vmem, size = 0x1000, scoped, tag = 'input window, operand 0, single buffered']
    #allocation6 [shape = 's32[1]{0}', space=sflag, size = 0x4, scoped, tag = 'scoped memory for tpu_custom_call.1']
    %12 = vsyncpa [#allocation6], 0
    // Predicated region
    $region2: #{tpu_custom_call.1} parent=1 // pred_check
      _
    $region3: #{tpu_custom_call.1} parent=1 // pred_check_branch
      %14 = sbr.rel (0) target = $region5
    $region4: #{tpu_custom_call.1} parent=1 // pred_region
      %s16 = ssub.s32 128, 128
      %17 = vsyncadd [#allocation6], %s16
      %s18 = sshll.u32 [#allocation5], 4
      %s19 = int_to_ptr.vmem [resolvable:$true] %s18
      %24 = dma.hbm_to_vmem [thread:$0]  %s0, 128, %s19, [#allocation6], 64, 64, 4
    $region5: #{tpu_custom_call.1} parent=1 // pred_fallthru
      _
    // Predicated region
    $region6: #{tpu_custom_call.1} parent=1 // pred_check
      _
    $region7: #{tpu_custom_call.1} parent=1 // pred_check_branch
      %26 = sbr.rel (0) target = $region9
    $region8: #{tpu_custom_call.1} parent=1 // pred_region
      _
    $region9: #{tpu_custom_call.1} parent=1 // pred_fallthru
      _
    // Predicated region
    $region10: #{tpu_custom_call.1} parent=1 // pred_check
      _
    $region11: #{tpu_custom_call.1} parent=1 // pred_check_branch
      %28 = sbr.rel (0) target = $region13
    $region12: #{tpu_custom_call.1} parent=1 // pred_region
      _
    $region13: #{tpu_custom_call.1} parent=1 // pred_fallthru
      _
    // Predicated region
    $region14: #{tpu_custom_call.1} parent=1 // pred_check
      _
    $region15: #{tpu_custom_call.1} parent=1 // pred_check_branch
      %30 = sbr.rel (0) target = $region17
    $region16: #{tpu_custom_call.1} parent=1 // pred_region
      _
    $region17: #{tpu_custom_call.1} parent=1 // pred_fallthru
      _
    // Predicated region
    $region18: #{tpu_custom_call.1} parent=1 // pred_check
      _
    $region19: #{tpu_custom_call.1} parent=1 // pred_check_branch
      %32 = sbr.rel (0) target = $region21
    $region20: #{tpu_custom_call.1} parent=1 // pred_region
      _
    $region21: #{tpu_custom_call.1} parent=1 // pred_fallthru
      _
    // Predicated region
    $region22: #{tpu_custom_call.1} parent=1 // pred_check
      _
    $region23: #{tpu_custom_call.1} parent=1 // pred_check_branch
      %34 = sbr.rel (0) target = $region25
    $region24: #{tpu_custom_call.1} parent=1 // pred_region
      _
    $region25: #{tpu_custom_call.1} parent=1 // pred_fallthru
      _
    // Predicated region
    $region26: #{tpu_custom_call.1} parent=1 // pred_check
      _
    $region27: #{tpu_custom_call.1} parent=1 // pred_check_branch
      %36 = sbr.rel (0) target = $region29
    $region28: #{tpu_custom_call.1} parent=1 // pred_region
      _
    $region29: #{tpu_custom_call.1} parent=1 // pred_fallthru
      _
    // Predicated region
    $region30: #{tpu_custom_call.1} parent=1 // pred_check
      _
    $region31: #{tpu_custom_call.1} parent=1 // pred_check_branch
      %38 = sbr.rel (0) target = $region33
    $region32: #{tpu_custom_call.1} parent=1 // pred_region
      %39 = dma.done [#allocation6], 128
    $region33: #{tpu_custom_call.1} parent=1 // pred_fallthru
      _
    %p41 = scmp.eq.s32.totalorder 0, 0
    // Predicated region
    $region34: #{tpu_custom_call.1} parent=1 // pred_check
      %p42 = pneg %p41
    $region35: #{tpu_custom_call.1} parent=1 // pred_check_branch
      %44 = sbr.rel (%p42) target = $region37
    $region36: #{tpu_custom_call.1} parent=1 // pred_region
      %vm45 = vcmask 7168
      %46 = vst.msk [vmem:[#allocation2] sm:$0xff] %vm45, -1e+30
      %47 = vst.msk [vmem:[#allocation2 + $0x8] sm:$0xff] %vm45, -1e+30
      %48 = vst.msk [vmem:[#allocation3] sm:$0xff] %vm45, 0.0
      %49 = vst.msk [vmem:[#allocation3 + $0x8] sm:$0xff] %vm45, 0.0
      %50 = vst.msk [vmem:[#allocation4] sm:$0xff] %vm45, 0.0
      %51 = vst.msk [vmem:[#allocation4 + $0x8] sm:$0xff] %vm45, 0.0
    $region37: #{tpu_custom_call.1} parent=1 // pred_fallthru
      _
    %v52 = vld [vmem:[#allocation5] sm:$0xf]
    %v53 = vld [vmem:[#allocation5 + $0x4] sm:$0xf]
    %v54 = vld [vmem:[%s5] sm:$0xf]
    %v55 = vld [vmem:[%s5 + $0x4] sm:$0xf]
    %v56 = vld [vmem:[%s5 + $0x8] sm:$0xf]
    %v57 = vld [vmem:[%s5 + $0xc] sm:$0xf]
    %v58 = vld [vmem:[%s5 + $0x10] sm:$0xf]
    %v59 = vld [vmem:[%s5 + $0x14] sm:$0xf]
    %v60 = vld [vmem:[%s5 + $0x18] sm:$0xf]
    %v61 = vld [vmem:[%s5 + $0x1c] sm:$0xf]
    %v62 = vld [vmem:[%s5 + $0x20] sm:$0xf]
    %v63 = vld [vmem:[%s5 + $0x24] sm:$0xf]
    %v64 = vld [vmem:[%s5 + $0x28] sm:$0xf]
    %v65 = vld [vmem:[%s5 + $0x2c] sm:$0xf]
    %v66 = vld [vmem:[%s5 + $0x30] sm:$0xf]
    %v67 = vld [vmem:[%s5 + $0x34] sm:$0xf]
    %v68 = vld [vmem:[%s5 + $0x38] sm:$0xf]
    %v69 = vld [vmem:[%s5 + $0x3c] sm:$0xf]
    %v72 = vunpack.c.l.b16 %v52
    %v73 = vunpack.c.l.b16 %v53
    %v74 = vpack.c.b16 %v73, %v72
    %v92 = vunpack.c.l.b16 %v54
    %v93 = vunpack.c.l.b16 %v55
    %v94 = vunpack.c.l.b16 %v56
    %v95 = vunpack.c.l.b16 %v57
    %v96 = vunpack.c.l.b16 %v58
    %v97 = vunpack.c.l.b16 %v59
    %v98 = vunpack.c.l.b16 %v60
    %v99 = vunpack.c.l.b16 %v61
    %v100 = vunpack.c.l.b16 %v62
    %v101 = vunpack.c.l.b16 %v63
    %v102 = vunpack.c.l.b16 %v64
    %v103 = vunpack.c.l.b16 %v65
    %v104 = vunpack.c.l.b16 %v66
    %v105 = vunpack.c.l.b16 %v67
    %v106 = vunpack.c.l.b16 %v68
    %v107 = vunpack.c.l.b16 %v69
    %v108 = vpack.c.b16 %v93, %v92
    %v109 = vpack.c.b16 %v95, %v94
    %v110 = vpack.c.b16 %v97, %v96
    %v111 = vpack.c.b16 %v99, %v98
    %v112 = vpack.c.b16 %v101, %v100
    %v113 = vpack.c.b16 %v103, %v102
    %v114 = vpack.c.b16 %v105, %v104
    %v115 = vpack.c.b16 %v107, %v106
    %124 = vmatprep.subr.bf16.mxu0 0
    %125 = vmatpush1.bf16.xpose.msra.mxu0 %v108
    %126 = vmatprep.subr.bf16.mxu0 0
    %127 = vmatpush1.bf16.xpose.msra.mxu0 %v109
    %128 = vmatprep.subr.bf16.mxu0 0
    %129 = vmatpush1.bf16.xpose.msra.mxu0 %v110
    %130 = vmatprep.subr.bf16.mxu0 0
    %131 = vmatpush1.bf16.xpose.msra.mxu0 %v111
    %132 = vmatprep.subr.bf16.mxu0 0
    %133 = vmatpush1.bf16.xpose.msra.mxu0 %v112
    %134 = vmatprep.subr.bf16.mxu0 0
    %135 = vmatpush1.bf16.xpose.msra.mxu0 %v113
    %136 = vmatprep.subr.bf16.mxu0 0
    %137 = vmatpush1.bf16.xpose.msra.mxu0 %v114
    %138 = vmatprep.subr.bf16.mxu0 0
    %139 = vmatpush1.bf16.xpose.msra.mxu0 %v115
    %140 = vmatprep.subr.bf16.mxu0 0
    %141 = vmatpush1.bf16.xpose.msra.mxu0 0
    %142 = vmatprep.subr.bf16.mxu0 0
    %143 = vmatpush1.bf16.xpose.msra.mxu0 0
    %144 = vmatprep.subr.bf16.mxu0 0
    %145 = vmatpush1.bf16.xpose.msra.mxu0 0
    %146 = vmatprep.subr.bf16.mxu0 0
    %147 = vmatpush1.bf16.xpose.msra.mxu0 0
    %148 = vmatprep.subr.bf16.mxu0 0
    %149 = vmatpush1.bf16.xpose.msra.mxu0 0
    %150 = vmatprep.subr.bf16.mxu0 0
    %151 = vmatpush1.bf16.xpose.msra.mxu0 0
    %152 = vmatprep.subr.bf16.mxu0 0
    %153 = vmatpush1.bf16.xpose.msra.mxu0 0
    %154 = vmatprep.subr.bf16.mxu0 0
    %155 = vmatpush1.bf16.xpose.msra.mxu0 0
    %156 = vmatprep.mubr.bf16.mxu0 0
    %157 = vmatmul.mubr.bf16.gmra.mrb[0].mxu0 %v74
    %v158 = vpop.f32.mrb[0].mxu0
    %v159 = vadd.f32 0.0, %v158
    %v160 = vpop.f32.mrb[0].mxu0
    %v161 = vpop.f32.mrb[0].mxu0
    %v162 = vadd.f32 0.0, %v161
    %v163 = vpop.f32.mrb[0].mxu0
    %164 = vdwg.mxu0
    %v165 = vld [vmem:[%s1] sm:$0xff]
    %v166 = vld [vmem:[%s1 + $0x8] sm:$0xff]
    %v167 = vld [vmem:[%s6] sm:$0x1]
    %169 = vset.pattern.permute.xlu0 0
    %170 = vperm.xlu0 %169, %v165
    %v171 = vpop.permute.xlu0 %170
    %174 = vset.pattern.permute.xlu0 0
    %175 = vperm.xlu0 %174, %v166
    %v176 = vpop.permute.xlu0 %175
    %v179 = vlaneseq
    %v180 = vshrl.u32 %v179, 7
    %v181 = vsub.s32 0, %v180
    %v182 = vrot.slane %v167, %v181
    %v184 = vadd.f32 %v171, %v182
    %v185 = vadd.f32 %v176, %v182
    %v186 = vmul.f32 %v159, 408.16327
    %v187 = vmul.f32 %v162, 408.16327
    %v188 = vsub.f32 %v184, %v186
    %v189 = vsub.f32 %v185, %v187
    %v190 = vmax.f32 %v188, 0.0
    %v191 = vmax.f32 %v189, 0.0
    %v192 = vrsqrt.pop %v190
    %v193 = vmul.f32 %v190, %v192
    %vm194 = vcmp.eq.f32.partialorder %v190, inf
    %v195 = vsel %vm194, %v190, %v193
    %vm196 = vcmp.eq.f32.partialorder %v190, 0.0
    %v197 = vand.u32 %v190, 2147483648
    %v198 = vsel %vm196, %v197, %v195
    %v199 = vrsqrt.pop %v191
    %v200 = vmul.f32 %v191, %v199
    %vm201 = vcmp.eq.f32.partialorder %v191, inf
    %v202 = vsel %vm201, %v191, %v200
    %vm203 = vcmp.eq.f32.partialorder %v191, 0.0
    %v204 = vand.u32 %v191, 2147483648
    %v205 = vsel %vm203, %v204, %v202
    %v206 = vsub.f32 0.0, %v198
    %v207 = vsub.f32 0.0, %v205
    %s208 = smul.u32 0, 16
    %v209 = vlaneseq
    %v210 = vshrl.u32 %v209, 7
    %v211 = vadd.s32 %v210, 8
    %v212 = vstv %s208
    %v213 = vadd.s32 %v212, %v210
    %v214 = vadd.s32 %v212, %v211
    %v215 = vld [vmem:[%s4] sm:$0x1]
    %v216 = vlaneseq
    %v217 = vshrl.u32 %v216, 7
    %v218 = vsub.s32 0, %v217
    %v219 = vrot.slane %v215, %v218
    %vm220 = vcmp.eq.s32.totalorder %v219, %v213
    %vm221 = vcmp.eq.s32.totalorder %v219, %v214
    %v222 = vld [vmem:[#allocation4] sm:$0xff]
    %v223 = vld [vmem:[#allocation4 + $0x8] sm:$0xff]
    %v224 = vsel %vm220, %v206, 0.0
    %v225 = vsel %vm221, %v207, 0.0
    %226 = vadd.xlane.f32.xlu0 %v224
    %v227 = vpop.xlane.xlu0 %226
    %228 = vadd.xlane.f32.xlu0 %v225
    %v229 = vpop.xlane.xlu0 %228
    %v230 = vadd.f32 %v222, %v227
    %v231 = vadd.f32 %v223, %v229
    %vm232 = vcmask 7168
    %233 = vst.msk [vmem:[#allocation4] sm:$0xff] %vm232, %v230
    %234 = vst.msk [vmem:[#allocation4 + $0x8] sm:$0xff] %vm232, %v231
    %v235 = vld [vmem:[#allocation2] sm:$0xff]
    %v236 = vld [vmem:[#allocation2 + $0x8] sm:$0xff]
    %237 = vmax.xlane.f32.xlu0 %v206
    %v238 = vpop.xlane.xlu0 %237
    %239 = vmax.xlane.f32.xlu0 %v207
    %v240 = vpop.xlane.xlu0 %239
    %v241 = vmax.f32 %v235, %v238
    %v242 = vmax.f32 %v236, %v240
    %244 = vset.pattern.permute.xlu0 0
    %245 = vperm.xlu0 %244, %v241
    %v246 = vpop.permute.xlu0 %245
    %249 = vset.pattern.permute.xlu0 0
    %250 = vperm.xlu0 %249, %v242
    %v251 = vpop.permute.xlu0 %250
    %v253 = vsub.f32 %v206, %v246
    %v254 = vsub.f32 %v207, %v251
    %v255 = vmul.f32 %v253, 1.442695
    %v256 = vpow.pop %v255
    %v257 = vmul.f32 %v254, 1.442695
    %v258 = vpow.pop %v257
    %v259 = vsub.f32 %v235, %v241
    %v260 = vsub.f32 %v236, %v242
    %v261 = vmul.f32 %v259, 1.442695
    %v262 = vpow.pop %v261
    %v263 = vmul.f32 %v260, 1.442695
    %v264 = vpow.pop %v263
    %v265 = vld [vmem:[#allocation3] sm:$0xff]
    %v266 = vld [vmem:[#allocation3 + $0x8] sm:$0xff]
    %v267 = vmul.f32 %v262, %v265
    %v268 = vmul.f32 %v264, %v266
    %269 = vadd.xlane.f32.xlu0 %v256
    %v270 = vpop.xlane.xlu0 %269
    %271 = vadd.xlane.f32.xlu0 %v258
    %v272 = vpop.xlane.xlu0 %271
    %v273 = vadd.f32 %v267, %v270
    %v274 = vadd.f32 %v268, %v272
    %275 = vst.msk [vmem:[#allocation3] sm:$0xff] %vm232, %v273
    %276 = vst.msk [vmem:[#allocation3 + $0x8] sm:$0xff] %vm232, %v274
    %277 = vst.msk [vmem:[#allocation2] sm:$0xff] %vm232, %v241
    %278 = vst.msk [vmem:[#allocation2 + $0x8] sm:$0xff] %vm232, %v242
    // Predicated region
    $region38: #{tpu_custom_call.1} parent=1 // pred_check
      %p279 = pneg %p41
    $region39: #{tpu_custom_call.1} parent=1 // pred_check_branch
      %281 = sbr.rel (%p279) target = $region41
    $region40: #{tpu_custom_call.1} parent=1 // pred_region
      %v282 = vld [vmem:[#allocation2] sm:$0xff]
      %v283 = vld [vmem:[#allocation2 + $0x8] sm:$0xff]
      %v284 = vld [vmem:[#allocation3] sm:$0xff]
      %v285 = vld [vmem:[#allocation3 + $0x8] sm:$0xff]
      %v286 = vlog2.pop %v284
      %v287 = vmul.f32 %v286, 0.6931472
      %v288 = vlog2.pop %v285
      %v289 = vmul.f32 %v288, 0.6931472
      %v290 = vadd.f32 %v282, %v287
      %v291 = vadd.f32 %v283, %v289
      %v292 = vld [vmem:[%s2] sm:$0xff]
      %v293 = vld [vmem:[%s2 + $0x8] sm:$0xff]
      %v294 = vld [vmem:[#allocation4] sm:$0xff]
      %v295 = vld [vmem:[#allocation4 + $0x8] sm:$0xff]
      %v296 = vmul.f32 %v292, %v294
      %v297 = vmul.f32 %v293, %v295
      %v298 = vld [vmem:[%s3] sm:$0xff]
      %v299 = vld [vmem:[%s3 + $0x8] sm:$0xff]
      %v300 = vmul.f32 %v290, %v298
      %v301 = vmul.f32 %v291, %v299
      %v302 = vsub.f32 %v296, %v300
      %v303 = vsub.f32 %v297, %v301
      %v304 = vmul.f32 %v302, -1.0
      %v305 = vmul.f32 %v303, -1.0
      %306 = vst.msk [vmem:[%s7] sm:$0xff] %vm232, %v304
      %307 = vst.msk [vmem:[%s7 + $0x8] sm:$0xff] %vm232, %v305
    $region41: #{tpu_custom_call.1} parent=1 // pred_fallthru
      _
    // Predicated region
    $region42: #{tpu_custom_call.1} parent=1 // pred_check
      _
    $region43: #{tpu_custom_call.1} parent=1 // pred_check_branch
      %309 = sbr.rel (0) target = $region45
    $region44: #{tpu_custom_call.1} parent=1 // pred_region
      _
    $region45: #{tpu_custom_call.1} parent=1 // pred_fallthru
      _
    // Predicated region
    $region46: #{tpu_custom_call.1} parent=1 // pred_check
      _
    $region47: #{tpu_custom_call.1} parent=1 // pred_check_branch
      %311 = sbr.rel (0) target = $region49
    $region48: #{tpu_custom_call.1} parent=1 // pred_region
      _
    $region49: #{tpu_custom_call.1} parent=1 // pred_fallthru
      _
    %312 = vsyncpa [#allocation6], 1

</llo_original>
